<compile_context>
chip_gen: v6e
topology: v6e:2x2x1
jax: 0.10.0
libtpu: 0.0.40
codegen_flags: <defaults>
</compile_context>

<pallas_src>
import jax
import jax.numpy as jnp
from jax import lax
from jax.experimental import pallas as pl
from jax.experimental.pallas import tpu as pltpu


_LANES = 128           # lane width of the slab; n % 128 == 0 -> zero-copy result
_CHUNK_ROWS = 512      # rows per in-kernel store chunk (512*128*4B = 256 KiB f32)
_PALLAS_MIN_N = 65536  # below this an XLA fill (which can fuse) wins


def _round_up(x, m):
    return ((x + m - 1) // m) * m


def _mean_fill_kernel(mean_ref, out_ref):
    # mean_ref: SMEM f32 scalar (shape (1,)); out_ref: VMEM (tile_rows, 128).
    # Fill the block in fixed-size row chunks (dynamic start on the *sublane*
    # dim only — well-supported) so code size is independent of tile size and
    # every vst is a full, unmasked vreg store.
    tile_rows, lanes = out_ref.shape
    chunk = min(_CHUNK_ROWS, tile_rows)        # wrapper keeps tile_rows % chunk == 0
    val = jnp.full((chunk, lanes), mean_ref[0], dtype=out_ref.dtype)  # hoisted splat

    def body(i, carry):
        start = pl.multiple_of(i * chunk, chunk)
        out_ref[pl.ds(start, chunk), :] = val
        return carry

    lax.fori_loop(0, tile_rows // chunk, body, 0)


def _tile_budget():
    # Big tiles amortize the ~0.35 us per-grid-step overhead; the output block
    # is double-buffered, so keep 2*tile comfortably inside this chip's VMEM.
    try:
        vmem_cap = int(pltpu.get_tpu_info().vmem_capacity_bytes)
    except Exception:
        vmem_cap = 64 << 20                    # conservative fallback (v7x physical)
    tile_bytes = max(1 << 20, min(16 << 20, vmem_cap // 8))   # v5e/v6e: 16 MiB, v7x: 8 MiB
    vmem_limit = min(vmem_cap, 2 * tile_bytes + (16 << 20))   # headroom over 2x tile
    return tile_bytes, vmem_limit


def mean_model_forward(mean, n, *, force_pallas=False):
    """Equivalent of MeanModel.forward(n): returns mean * ones(n)."""
    if n <= 0:
        raise ValueError('Demand values must be positive ')

    mean = jnp.asarray(mean).reshape((1,))
    out_dtype = mean.dtype

    # Small-n fast path: a constant fill is pure HBM-write roofline; jnp.full
    # already hits it and additionally fuses into downstream consumers.
    if n < _PALLAS_MIN_N and not force_pallas:
        return jnp.full((n,), mean[0], dtype=out_dtype)

    itemsize = jnp.dtype(out_dtype).itemsize
    tile_bytes, vmem_limit = _tile_budget()

    rows = pl.cdiv(n, _LANES)                          # exact slab: <= one masked edge block
    budget_rows = _round_up(max(1, tile_bytes // (_LANES * itemsize)), _CHUNK_ROWS)
    tile_rows = min(budget_rows, _round_up(rows, _CHUNK_ROWS))
    grid = (pl.cdiv(rows, tile_rows),)

    mean_smem = mean.astype(jnp.float32)               # SMEM scalar path is 32-bit

    out2d = pl.pallas_call(
        _mean_fill_kernel,
        out_shape=jax.ShapeDtypeStruct((rows, _LANES), out_dtype),
        grid=grid,
        in_specs=[pl.BlockSpec(memory_space=pltpu.SMEM)],
        # Default double buffering; pipeline_mode=pl.Buffered(3) is a possible
        # v7x-only sweep if write DMAs ever expose a bubble.
        out_specs=pl.BlockSpec((tile_rows, _LANES), lambda i: (i, 0)),
        compiler_params=pltpu.CompilerParams(
            # "parallel" lets v7x shard the fill across both TensorCores
            # (no-op on single-TC v5e/v6e); switch to pltpu.CORE_PARALLEL only
            # after xprof confirms a single TC can't saturate HBM writes.
            dimension_semantics=("parallel",),
            vmem_limit_bytes=vmem_limit,
        ),
    )(mean_smem)

    flat = out2d.reshape(rows * _LANES)                # row-major reshape: free, no copy
    if rows * _LANES == n:
        return flat                                    # zero-copy path (n % 128 == 0)
    # Residual n-element slice only when n is not lane-aligned (reviewer's
    # fallback (b): kept the dense 2-D slab instead of a 1-D exact-(n,) output
    # to preserve unmasked full-vreg stores inside the kernel).
    return flat[:n]


if __name__ == "__main__":
    key = jax.random.PRNGKey(0)
    # nn.Parameter(torch.randn(1)) -> deterministic scalar parameter of shape (1,)
    mean_param = jax.random.normal(key, (1,), dtype=jnp.float32)

    # 1) Pallas path, n NOT a multiple of 128 (masked edge block + tail slice).
    n1 = 4101
    out1 = jax.block_until_ready(mean_model_forward(mean_param, n1, force_pallas=True))
    assert out1.shape == (n1,)
    assert jnp.allclose(out1, mean_param[0] * jnp.ones((n1,), jnp.float32))

    # 2) Pallas path, n a multiple of 128 (zero-copy: free reshape, no slice).
    n2 = 8192
    out2 = jax.block_until_ready(mean_model_forward(mean_param, n2, force_pallas=True))
    assert out2.shape == (n2,)
    assert jnp.allclose(out2, mean_param[0] * jnp.ones((n2,), jnp.float32))

    # 3) Small-n fast path (no Pallas launch; XLA fill fuses into consumers).
    n3 = 64
    out3 = jax.block_until_ready(mean_model_forward(mean_param, n3))
    assert out3.shape == (n3,)
    assert jnp.allclose(out3, mean_param[0] * jnp.ones((n3,), jnp.float32))

    print("KERNEL_OK")
</pallas_src>

<mosaic_0001>
module attributes {stable_mosaic.version = 11 : i64} {
  func.func @_mean_fill_kernel(%arg0: i32, %arg1: memref<1xf32, #tpu.memory_space<smem>>, %arg2: memref<512x128xf32, #tpu.memory_space<vmem>>) attributes {dimension_semantics = [#tpu.dimension_semantics<parallel>], iteration_bounds = array<i64: 1>, scalar_prefetch = 0 : i64, scratch_operands = 0 : i64, tpu.core_type = #tpu.core_type<tc>, window_params = [{transform_indices = @transform_0, window_bounds = array<i64: 1>}, {transform_indices = @transform_1, window_bounds = array<i64: 512, 128>}]} {
    %c0 = arith.constant 0 : index
    %0 = memref.load %arg1[%c0] : memref<1xf32, #tpu.memory_space<smem>>
    %1 = vector.broadcast %0 : f32 to vector<512x128xf32>
    %c0_i32 = arith.constant 0 : i32
    %c512_i32 = arith.constant 512 : i32
    %2 = arith.muli %c0_i32, %c512_i32 : i32
    %3 = tpu.assume_multiple %2, 512 : i32
    %4 = arith.index_cast %3 : i32 to index
    %c0_0 = arith.constant 0 : index
    %5 = vector.load %arg2[%4, %c0_0] : memref<512x128xf32, #tpu.memory_space<vmem>>, vector<512x128xf32>
    tpu.vector_store %arg2[%4, %c0_0], %1 {strides = array<i32>} : memref<512x128xf32, #tpu.memory_space<vmem>>, vector<512x128xf32>,
    %c1_i32 = arith.constant 1 : i32
    return
  }
  func.func @transform_0(%arg0: i32) -> i32 {
    %c0_i32 = arith.constant 0 : i32
    %c0_i32_0 = arith.constant 0 : i32
    return %c0_i32 : i32
  }
  func.func @transform_1(%arg0: i32) -> (i32, i32) {
    %c0_i32 = arith.constant 0 : i32
    %c0_i32_0 = arith.constant 0 : i32
    return %arg0, %c0_i32 : i32, i32
  }
}

</mosaic_0001>

<llo_original>
// kernel: tpu_custom_call.1
$region0: #{tpu_custom_call.1}
  #allocation0 [shape = 'u32[]', space=smem, size = 0x4, offset = 0x4, fixed_abs, tag = 'smem constant byte address 0x4 - core index']
  #allocation1 [shape = 'u32[144,128]{1,0:T(1,128)}', space=vmem, size = 0x12000, scoped, tag = 'internal scratch']
  #allocation2 [shape = 'f32[1]{0:T(128)S(6)}', space=smem, size = 0x200, scoped, tag = 'scoped memory for tpu_custom_call.1']
  %s0 = inlined_call_operand.<no memory space> [shape: f32[1], index: 0, kind: input, shape index: {}]
  %s1 = inlined_call_operand.hbm [shape: f32[33,128], index: 1, kind: output, shape index: {}]
  %s2 = sld [smem:[#allocation0]]
  $region14: #{tpu_custom_call.1} parent=0
    _
  %s4 = ssub.s32 1, %s2
  %s5 = scalar_select 0, %s4, %s2
  %6 = sst [smem:[#allocation2]] %s0
  $region1: #{tpu_custom_call.1} parent=0
    #allocation3 [shape = 'u8[262144]{0}', space=vmem, size = 0x40000, scoped, tag = 'output window, operand 0, single buffered']
    #allocation4 [shape = 's32[1]{0}', space=sflag, size = 0x4, scoped, tag = 'scoped memory for tpu_custom_call.1']
    %7 = vsyncpa [#allocation4], 0
    // Predicated region
    $region2: #{tpu_custom_call.1} parent=1 // pred_check
      _
    $region3: #{tpu_custom_call.1} parent=1 // pred_check_branch
      %9 = sbr.rel (0) target = $region5
    $region4: #{tpu_custom_call.1} parent=1 // pred_region
      _
    $region5: #{tpu_custom_call.1} parent=1 // pred_fallthru
      _
    %s10 = sld [smem:[#allocation2]]
    %v11 = vstv %s10
    %12 = vst [vmem:[#allocation3] sm:$0xff] %v11
    %13 = vst [vmem:[#allocation3 + $0x8] sm:$0xff] %v11
    %14 = vst [vmem:[#allocation3 + $0x10] sm:$0xff] %v11
    %15 = vst [vmem:[#allocation3 + $0x18] sm:$0xff] %v11
    %16 = vst [vmem:[#allocation3 + $0x20] sm:$0xff] %v11
    %17 = vst [vmem:[#allocation3 + $0x28] sm:$0xff] %v11
    %18 = vst [vmem:[#allocation3 + $0x30] sm:$0xff] %v11
    %19 = vst [vmem:[#allocation3 + $0x38] sm:$0xff] %v11
    %20 = vst [vmem:[#allocation3 + $0x40] sm:$0xff] %v11
    %21 = vst [vmem:[#allocation3 + $0x48] sm:$0xff] %v11
    %22 = vst [vmem:[#allocation3 + $0x50] sm:$0xff] %v11
    %23 = vst [vmem:[#allocation3 + $0x58] sm:$0xff] %v11
    %24 = vst [vmem:[#allocation3 + $0x60] sm:$0xff] %v11
    %25 = vst [vmem:[#allocation3 + $0x68] sm:$0xff] %v11
    %26 = vst [vmem:[#allocation3 + $0x70] sm:$0xff] %v11
    %27 = vst [vmem:[#allocation3 + $0x78] sm:$0xff] %v11
    %28 = vst [vmem:[#allocation3 + $0x80] sm:$0xff] %v11
    %29 = vst [vmem:[#allocation3 + $0x88] sm:$0xff] %v11
    %30 = vst [vmem:[#allocation3 + $0x90] sm:$0xff] %v11
    %31 = vst [vmem:[#allocation3 + $0x98] sm:$0xff] %v11
    %32 = vst [vmem:[#allocation3 + $0xa0] sm:$0xff] %v11
    %33 = vst [vmem:[#allocation3 + $0xa8] sm:$0xff] %v11
    %34 = vst [vmem:[#allocation3 + $0xb0] sm:$0xff] %v11
    %35 = vst [vmem:[#allocation3 + $0xb8] sm:$0xff] %v11
    %36 = vst [vmem:[#allocation3 + $0xc0] sm:$0xff] %v11
    %37 = vst [vmem:[#allocation3 + $0xc8] sm:$0xff] %v11
    %38 = vst [vmem:[#allocation3 + $0xd0] sm:$0xff] %v11
    %39 = vst [vmem:[#allocation3 + $0xd8] sm:$0xff] %v11
    %40 = vst [vmem:[#allocation3 + $0xe0] sm:$0xff] %v11
    %41 = vst [vmem:[#allocation3 + $0xe8] sm:$0xff] %v11
    %42 = vst [vmem:[#allocation3 + $0xf0] sm:$0xff] %v11
    %43 = vst [vmem:[#allocation3 + $0xf8] sm:$0xff] %v11
    %44 = vst [vmem:[#allocation3 + $0x100] sm:$0xff] %v11
    %45 = vst [vmem:[#allocation3 + $0x108] sm:$0xff] %v11
    %46 = vst [vmem:[#allocation3 + $0x110] sm:$0xff] %v11
    %47 = vst [vmem:[#allocation3 + $0x118] sm:$0xff] %v11
    %48 = vst [vmem:[#allocation3 + $0x120] sm:$0xff] %v11
    %49 = vst [vmem:[#allocation3 + $0x128] sm:$0xff] %v11
    %50 = vst [vmem:[#allocation3 + $0x130] sm:$0xff] %v11
    %51 = vst [vmem:[#allocation3 + $0x138] sm:$0xff] %v11
    %52 = vst [vmem:[#allocation3 + $0x140] sm:$0xff] %v11
    %53 = vst [vmem:[#allocation3 + $0x148] sm:$0xff] %v11
    %54 = vst [vmem:[#allocation3 + $0x150] sm:$0xff] %v11
    %55 = vst [vmem:[#allocation3 + $0x158] sm:$0xff] %v11
    %56 = vst [vmem:[#allocation3 + $0x160] sm:$0xff] %v11
    %57 = vst [vmem:[#allocation3 + $0x168] sm:$0xff] %v11
    %58 = vst [vmem:[#allocation3 + $0x170] sm:$0xff] %v11
    %59 = vst [vmem:[#allocation3 + $0x178] sm:$0xff] %v11
    %60 = vst [vmem:[#allocation3 + $0x180] sm:$0xff] %v11
    %61 = vst [vmem:[#allocation3 + $0x188] sm:$0xff] %v11
    %62 = vst [vmem:[#allocation3 + $0x190] sm:$0xff] %v11
    %63 = vst [vmem:[#allocation3 + $0x198] sm:$0xff] %v11
    %64 = vst [vmem:[#allocation3 + $0x1a0] sm:$0xff] %v11
    %65 = vst [vmem:[#allocation3 + $0x1a8] sm:$0xff] %v11
    %66 = vst [vmem:[#allocation3 + $0x1b0] sm:$0xff] %v11
    %67 = vst [vmem:[#allocation3 + $0x1b8] sm:$0xff] %v11
    %68 = vst [vmem:[#allocation3 + $0x1c0] sm:$0xff] %v11
    %69 = vst [vmem:[#allocation3 + $0x1c8] sm:$0xff] %v11
    %70 = vst [vmem:[#allocation3 + $0x1d0] sm:$0xff] %v11
    %71 = vst [vmem:[#allocation3 + $0x1d8] sm:$0xff] %v11
    %72 = vst [vmem:[#allocation3 + $0x1e0] sm:$0xff] %v11
    %73 = vst [vmem:[#allocation3 + $0x1e8] sm:$0xff] %v11
    %74 = vst [vmem:[#allocation3 + $0x1f0] sm:$0xff] %v11
    %75 = vst [vmem:[#allocation3 + $0x1f8] sm:$0xff] %v11
    // Predicated region
    $region6: #{tpu_custom_call.1} parent=1 // pred_check
      _
    $region7: #{tpu_custom_call.1} parent=1 // pred_check_branch
      %77 = sbr.rel (0) target = $region9
    $region8: #{tpu_custom_call.1} parent=1 // pred_region
      %s79 = ssub.s32 8192, 640
      %80 = vsyncadd [#allocation4], %s79
      %s81 = sshll.u32 [#allocation3], 4
      %s82 = int_to_ptr.vmem [resolvable:$true] %s81
      %87 = dma.vmem_to_hbm [thread:$0]  %s82, 640, %s1, [#allocation4], 128, 128, 8
    $region9: #{tpu_custom_call.1} parent=1 // pred_fallthru
      _
    // Predicated region
    $region10: #{tpu_custom_call.1} parent=1 // pred_check
      _
    $region11: #{tpu_custom_call.1} parent=1 // pred_check_branch
      %89 = sbr.rel (0) target = $region13
    $region12: #{tpu_custom_call.1} parent=1 // pred_region
      %90 = dma.done [#allocation4], 8192
    $region13: #{tpu_custom_call.1} parent=1 // pred_fallthru
      _
    %91 = vsyncpa [#allocation4], 1

</llo_original>
